<compile_context>
chip_gen: v6e
topology: v6e:2x2x1
jax: 0.10.0
libtpu: 0.0.40
codegen_flags: <defaults>
</compile_context>

<pallas_src>
import functools

import jax
import jax.numpy as jnp
import numpy as np
from jax.experimental import pallas as pl
from jax.experimental.pallas import tpu as pltpu


# ----------------------------------------------------------------------------
# Kernel: bilinear grid-sample (border padding) as transposed tent-weight matmul
# ----------------------------------------------------------------------------
def _grid_sample_kernel_t(pos_ref, base_t_ref, cells_ref, out_ref, *, wb, hb,
                          align_corners, normalized_interpolation, log_scale):
    # pos_ref:    [2, TQ]      row 0 = x, row 1 = y (raw positions)
    # base_t_ref: [C, hb*wb]   transposed flattened base embedding (col = y*wb+x)
    # cells_ref:  [hb*wb, 2]   col 0 = cell x coord, col 1 = cell y coord
    # out_ref:    [C, TQ]
    pos = pos_ref[...].astype(jnp.float32)
    gx = pos[0:1, :]                                  # [1, TQ]
    gy = pos[1:2, :]                                  # [1, TQ]

    # Fold (optional) position normalisation and grid_sample coordinate
    # unnormalisation into a single affine transform per axis (compile-time
    # Python constants -> one fma per axis on the VPU).
    sx = (1.0 / (0.5 * wb)) if normalized_interpolation else 1.0
    sy = (1.0 / (0.5 * hb)) if normalized_interpolation else 1.0
    if align_corners:
        ax, bx = 0.5 * (wb - 1) * sx, 0.5 * (wb - 1)
        ay, by = 0.5 * (hb - 1) * sy, 0.5 * (hb - 1)
    else:
        ax, bx = 0.5 * wb * sx, 0.5 * (wb - 1)
        ay, by = 0.5 * hb * sy, 0.5 * (hb - 1)

    # padding_mode='border': clamp the source coordinate to the valid range.
    ix = jnp.clip(gx * ax + bx, 0.0, float(wb - 1))   # [1, TQ]
    iy = jnp.clip(gy * ay + by, 0.0, float(hb - 1))   # [1, TQ]

    # Precomputed cell centres (no integer %,// in the kernel body).
    xc = cells_ref[:, 0:1]                            # [K, 1]
    yc = cells_ref[:, 1:2]                            # [K, 1]

    # Tent (hat) weights, transposed: [K, TQ] with queries on the lane axis.
    wx = jnp.maximum(1.0 - jnp.abs(ix - xc), 0.0)     # [K, TQ]
    wy = jnp.maximum(1.0 - jnp.abs(iy - yc), 0.0)     # [K, TQ]
    w_t = wx * wy                                     # [K, TQ]

    # base_T [C, K] @ w_T [K, TQ] -> [C, TQ]: MXU N dimension = TQ (lane-dense).
    out = jnp.dot(base_t_ref[...].astype(jnp.float32), w_t,
                  preferred_element_type=jnp.float32)
    if log_scale:
        out = jnp.log(jnp.clip(out, 1e-6))
    out_ref[...] = out.astype(out_ref.dtype)


# ----------------------------------------------------------------------------
# Kernel: elementwise log/clamp path (non-approximate mode with log_scale)
# ----------------------------------------------------------------------------
def _log_clamp_kernel(x_ref, o_ref):
    o_ref[...] = jnp.log(jnp.clip(x_ref[...].astype(jnp.float32), 1e-6))


def _log_clamp_lane_dense(x, *, lane=1024, max_block_rows=256):
    """Apply log(clamp(x, 1e-6)) over a lane-dense 2-D slab of the flat data."""
    shape = x.shape
    flat = x.reshape(-1).astype(jnp.float32)
    total = flat.shape[0]
    rows = pl.cdiv(total, lane)
    block_rows = min(max_block_rows, ((rows + 7) // 8) * 8)
    rows_p = pl.cdiv(rows, block_rows) * block_rows
    pad = rows_p * lane - total
    if pad:
        flat = jnp.pad(flat, (0, pad), constant_values=1.0)
    slab = flat.reshape(rows_p, lane)
    out = pl.pallas_call(
        _log_clamp_kernel,
        out_shape=jax.ShapeDtypeStruct((rows_p, lane), jnp.float32),
        grid=(rows_p // block_rows,),
        in_specs=[pl.BlockSpec((block_rows, lane), lambda i: (i, 0))],
        out_specs=pl.BlockSpec((block_rows, lane), lambda i: (i, 0)),
        compiler_params=pltpu.CompilerParams(
            dimension_semantics=("parallel",)),
    )(slab)
    return out.reshape(-1)[:total].reshape(shape)


# ----------------------------------------------------------------------------
# Tiling helper: largest power-of-two multiple of 128 <= tq_max that still
# leaves at least 2 grid steps (so v7x can shard across both TensorCores).
# ----------------------------------------------------------------------------
def _choose_query_tile(Q, tq_max=512):
    tq_max = max(128, (tq_max // 128) * 128)
    tq = 128
    while tq * 2 <= tq_max and Q > tq * 2:
        tq *= 2
    return tq


# ----------------------------------------------------------------------------
# "Module": deterministic buffer construction + forward wrapper
# ----------------------------------------------------------------------------
def init_embedding_map(w, h, input_channels):
    """Equivalent of BasePositionalEncoding.init_embedding_map (deterministic)."""
    half_w, half_h = w // 2, h // 2
    xs = jnp.arange(-half_w, half_w + 1, dtype=jnp.float32)        # [2*half_w+1]
    ys = jnp.arange(-half_h, half_h + 1, dtype=jnp.float32)        # [2*half_h+1]
    x_map = jnp.tile(xs[None, :], (2 * half_h + 1, 1))             # [h, w]
    y_map = jnp.tile(ys[:, None], (1, 2 * half_w + 1))             # [h, w]
    base = jnp.stack([x_map, y_map], axis=-1)                      # [h, w, 2]
    if input_channels > 2:
        zeros = jnp.zeros((base.shape[0], base.shape[1], input_channels - 2),
                          jnp.float32)
        base = jnp.concatenate([base, zeros], axis=-1)
    return base[None, ...]                                         # [1, h, w, C]


def base_positional_encoding_forward(positions,
                                     base_embedding=None,
                                     *,
                                     base_size=None,
                                     align_corners=False,
                                     normalized_interpolation=True,
                                     log_scale=False,
                                     tq=512):
    """Forward pass. positions: [N, H, W, 2] (approximate mode) or [N, *, Cin]."""
    if base_size is None:
        # Non-approximate mode: preprocess/postprocess are identity.
        if not log_scale:
            return positions  # pure identity -- glue, no kernel needed
        return _log_clamp_lane_dense(positions)

    # ---------------- approximate mode ----------------
    wb, hb = base_size
    N, H, W, two = positions.shape
    assert two == 2, "approximate mode requires [N,H,W,2] positions"
    C = base_embedding.shape[-1]
    K = hb * wb

    q = positions.reshape(-1, 2).astype(jnp.float32)               # [Q, 2]
    Q = q.shape[0]
    tq_eff = _choose_query_tile(Q, tq)
    Qp = pl.cdiv(Q, tq_eff) * tq_eff
    if Qp != Q:
        q = jnp.pad(q, ((0, Qp - Q), (0, 0)))
    q_t = q.T                                                      # [2, Qp]

    # Transposed flat base map: column j = flat cell j (row = y*wb + x).
    base_t = base_embedding.reshape(K, C).astype(jnp.float32).T    # [C, K]

    # Host-precomputed cell-centre coordinates (hoisted out of the kernel).
    cell_idx = np.arange(K)
    cells = jnp.asarray(
        np.stack([cell_idx % wb, cell_idx // wb], axis=-1).astype(np.float32))

    kernel = functools.partial(
        _grid_sample_kernel_t, wb=wb, hb=hb, align_corners=align_corners,
        normalized_interpolation=normalized_interpolation, log_scale=log_scale)

    out_t = pl.pallas_call(
        kernel,
        out_shape=jax.ShapeDtypeStruct((C, Qp), jnp.float32),
        grid=(Qp // tq_eff,),
        in_specs=[
            pl.BlockSpec((2, tq_eff), lambda i: (0, i)),           # query tile
            pl.BlockSpec((C, K), lambda i: (0, 0)),                # resident base
            pl.BlockSpec((K, 2), lambda i: (0, 0)),                # resident cells
        ],
        out_specs=pl.BlockSpec((C, tq_eff), lambda i: (0, i)),     # lane-dense out
        compiler_params=pltpu.CompilerParams(
            dimension_semantics=("parallel",)),
    )(q_t, base_t, cells)

    # Un-transpose (layout plumbing in the wrapper), drop padding, reshape.
    return out_t.T[:Q].reshape(N, H, W, C)                         # [N,H,W,C]


# ----------------------------------------------------------------------------
if __name__ == "__main__":
    # Module config (synthetic, deterministic)
    input_channels = 2
    base_size = (9, 9)           # (w, h)
    align_corners = False
    normalized_interpolation = True
    log_scale = False

    # Deterministic buffer (this is what register_buffer('base_embedding', ...) holds)
    base_embedding = init_embedding_map(base_size[0], base_size[1],
                                        input_channels)            # [1, 9, 9, 2]

    # Small example positions: [N, H, W, 2]
    key = jax.random.PRNGKey(0)
    N, H, W = 2, 8, 8
    positions = jax.random.uniform(key, (N, H, W, 2), jnp.float32,
                                   minval=-4.5, maxval=4.5)

    out = base_positional_encoding_forward(
        positions, base_embedding,
        base_size=base_size,
        align_corners=align_corners,
        normalized_interpolation=normalized_interpolation,
        log_scale=log_scale)
    out = jax.block_until_ready(out)

    # Analytic reference: the base map is the (x-4, y-4) coordinate grid, so
    # bilinear grid_sample with border padding yields clamp(src_coord) - half.
    wb, hb = base_size
    p = np.asarray(positions, np.float64)
    gx = p[..., 0] / (0.5 * wb)
    gy = p[..., 1] / (0.5 * hb)
    ix = np.clip(((gx + 1.0) * wb - 1.0) * 0.5, 0.0, wb - 1)
    iy = np.clip(((gy + 1.0) * hb - 1.0) * 0.5, 0.0, hb - 1)
    ref = np.stack([ix - (wb // 2), iy - (hb // 2)], axis=-1)
    np.testing.assert_allclose(np.asarray(out, np.float64), ref,
                               rtol=1e-5, atol=1e-5)
    assert out.shape == (N, H, W, input_channels)

    # Also exercise the non-approximate + log_scale elementwise path.
    pos_abs = jnp.abs(positions) + 0.5
    log_out = jax.block_until_ready(
        base_positional_encoding_forward(pos_abs, base_size=None, log_scale=True))
    np.testing.assert_allclose(
        np.asarray(log_out, np.float64),
        np.log(np.clip(np.asarray(pos_abs, np.float64), 1e-6, None)),
        rtol=1e-5, atol=1e-5)

    print("KERNEL_OK")
</pallas_src>

<mosaic_0001>
module attributes {stable_mosaic.version = 11 : i64} {
  func.func @_grid_sample_kernel_t(%arg0: i32, %arg1: memref<2x128xf32, #tpu.memory_space<vmem>>, %arg2: memref<2x81xf32, #tpu.memory_space<vmem>>, %arg3: memref<81x2xf32, #tpu.memory_space<vmem>>, %arg4: memref<2x128xf32, #tpu.memory_space<vmem>>) attributes {dimension_semantics = [#tpu.dimension_semantics<parallel>], iteration_bounds = array<i64: 1>, scalar_prefetch = 0 : i64, scratch_operands = 0 : i64, tpu.core_type = #tpu.core_type<tc>, window_params = [{transform_indices = @transform_0, window_bounds = array<i64: 2, 128>}, {pipeline_mode = #tpu.pipeline_mode<synchronous>, transform_indices = @transform_1, window_bounds = array<i64: 2, 81>}, {pipeline_mode = #tpu.pipeline_mode<synchronous>, transform_indices = @transform_2, window_bounds = array<i64: 81, 2>}, {transform_indices = @transform_3, window_bounds = array<i64: 2, 128>}]} {
    %c0 = arith.constant 0 : index
    %c0_0 = arith.constant 0 : index
    %0 = vector.load %arg1[%c0, %c0_0] : memref<2x128xf32, #tpu.memory_space<vmem>>, vector<2x128xf32>
    %1 = vector.extract_strided_slice %0 {offsets = [0, 0], sizes = [1, 128], strides = [1, 1]} : vector<2x128xf32> to vector<1x128xf32>
    %2 = vector.extract_strided_slice %0 {offsets = [1, 0], sizes = [1, 128], strides = [1, 1]} : vector<2x128xf32> to vector<1x128xf32>
    %cst = arith.constant 1.000000e+00 : f32
    %3 = vector.broadcast %cst : f32 to vector<1x128xf32>
    %4 = arith.mulf %1, %3 : vector<1x128xf32>
    %cst_1 = arith.constant 4.000000e+00 : f32
    %5 = vector.broadcast %cst_1 : f32 to vector<1x128xf32>
    %6 = arith.addf %4, %5 : vector<1x128xf32>
    %cst_2 = arith.constant 0.000000e+00 : f32
    %cst_3 = arith.constant 8.000000e+00 : f32
    %7 = vector.broadcast %cst_2 : f32 to vector<1x128xf32>
    %8 = arith.maximumf %7, %6 : vector<1x128xf32>
    %9 = vector.broadcast %cst_3 : f32 to vector<1x128xf32>
    %10 = arith.minimumf %9, %8 : vector<1x128xf32>
    %cst_4 = arith.constant 1.000000e+00 : f32
    %11 = vector.broadcast %cst_4 : f32 to vector<1x128xf32>
    %12 = arith.mulf %2, %11 : vector<1x128xf32>
    %cst_5 = arith.constant 4.000000e+00 : f32
    %13 = vector.broadcast %cst_5 : f32 to vector<1x128xf32>
    %14 = arith.addf %12, %13 : vector<1x128xf32>
    %cst_6 = arith.constant 0.000000e+00 : f32
    %cst_7 = arith.constant 8.000000e+00 : f32
    %15 = vector.broadcast %cst_6 : f32 to vector<1x128xf32>
    %16 = arith.maximumf %15, %14 : vector<1x128xf32>
    %17 = vector.broadcast %cst_7 : f32 to vector<1x128xf32>
    %18 = arith.minimumf %17, %16 : vector<1x128xf32>
    %c0_8 = arith.constant 0 : index
    %c0_9 = arith.constant 0 : index
    %19 = vector.load %arg3[%c0_8, %c0_9] : memref<81x2xf32, #tpu.memory_space<vmem>>, vector<81x1xf32>
    %c0_10 = arith.constant 0 : index
    %c1 = arith.constant 1 : index
    %20 = vector.load %arg3[%c0_10, %c1] : memref<81x2xf32, #tpu.memory_space<vmem>>, vector<81x1xf32>
    %21 = vector.broadcast %10 : vector<1x128xf32> to vector<81x128xf32>
    %22 = vector.broadcast %19 : vector<81x1xf32> to vector<81x128xf32>
    %23 = arith.subf %21, %22 : vector<81x128xf32>
    %24 = math.absf %23 : vector<81x128xf32>
    %cst_11 = arith.constant 1.000000e+00 : f32
    %25 = vector.broadcast %cst_11 : f32 to vector<81x128xf32>
    %26 = arith.subf %25, %24 : vector<81x128xf32>
    %cst_12 = arith.constant 0.000000e+00 : f32
    %27 = vector.broadcast %cst_12 : f32 to vector<81x128xf32>
    %28 = arith.maximumf %26, %27 : vector<81x128xf32>
    %29 = vector.broadcast %18 : vector<1x128xf32> to vector<81x128xf32>
    %30 = vector.broadcast %20 : vector<81x1xf32> to vector<81x128xf32>
    %31 = arith.subf %29, %30 : vector<81x128xf32>
    %32 = math.absf %31 : vector<81x128xf32>
    %cst_13 = arith.constant 1.000000e+00 : f32
    %33 = vector.broadcast %cst_13 : f32 to vector<81x128xf32>
    %34 = arith.subf %33, %32 : vector<81x128xf32>
    %cst_14 = arith.constant 0.000000e+00 : f32
    %35 = vector.broadcast %cst_14 : f32 to vector<81x128xf32>
    %36 = arith.maximumf %34, %35 : vector<81x128xf32>
    %37 = arith.mulf %28, %36 : vector<81x128xf32>
    %c0_15 = arith.constant 0 : index
    %c0_16 = arith.constant 0 : index
    %38 = vector.load %arg2[%c0_15, %c0_16] : memref<2x81xf32, #tpu.memory_space<vmem>>, vector<2x81xf32>
    %cst_17 = arith.constant dense<0.000000e+00> : vector<2x128xf32>
    %39 = tpu.matmul %38, %37, %cst_17 {dimension_numbers = #tpu.dot_dimension_numbers<[1], [0], [0], [1], [0, 0, 1, 1], [], []>} : vector<2x81xf32>, vector<81x128xf32>, vector<2x128xf32> -> vector<2x128xf32>
    %c0_18 = arith.constant 0 : index
    %c0_19 = arith.constant 0 : index
    %40 = vector.load %arg4[%c0_18, %c0_19] : memref<2x128xf32, #tpu.memory_space<vmem>>, vector<2x128xf32>
    tpu.vector_store %arg4[%c0_18, %c0_19], %39 {strides = array<i32>} : memref<2x128xf32, #tpu.memory_space<vmem>>, vector<2x128xf32>,
    return
  }
  func.func @transform_0(%arg0: i32) -> (i32, i32) {
    %c0_i32 = arith.constant 0 : i32
    %c0_i32_0 = arith.constant 0 : i32
    return %c0_i32, %arg0 : i32, i32
  }
  func.func @transform_1(%arg0: i32) -> (i32, i32) {
    %c0_i32 = arith.constant 0 : i32
    %c0_i32_0 = arith.constant 0 : i32
    %c0_i32_1 = arith.constant 0 : i32
    return %c0_i32, %c0_i32_0 : i32, i32
  }
  func.func @transform_2(%arg0: i32) -> (i32, i32) {
    %c0_i32 = arith.constant 0 : i32
    %c0_i32_0 = arith.constant 0 : i32
    %c0_i32_1 = arith.constant 0 : i32
    return %c0_i32, %c0_i32_0 : i32, i32
  }
  func.func @transform_3(%arg0: i32) -> (i32, i32) {
    %c0_i32 = arith.constant 0 : i32
    %c0_i32_0 = arith.constant 0 : i32
    return %c0_i32, %arg0 : i32, i32
  }
}

</mosaic_0001>

<llo_original>
// kernel: tpu_custom_call.1
$region0: #{tpu_custom_call.1}
  #allocation0 [shape = 'u32[]', space=smem, size = 0x4, offset = 0x4, fixed_abs, tag = 'smem constant byte address 0x4 - core index']
  #allocation1 [shape = 'u32[144,128]{1,0:T(1,128)}', space=vmem, size = 0x12000, scoped, tag = 'internal scratch']
  %s0 = inlined_call_operand.vmem [shape: f32[2,128], index: 0, kind: input, shape index: {}]
  %s1 = inlined_call_operand.vmem [shape: f32[2,81], index: 1, kind: input, shape index: {}]
  %s2 = inlined_call_operand.vmem [shape: f32[81,2], index: 2, kind: input, shape index: {}]
  %s3 = inlined_call_operand.hbm [shape: f32[2,128], index: 3, kind: output, shape index: {}]
  %s4 = sld [smem:[#allocation0]]
  $region22: #{tpu_custom_call.1} parent=0
    _
  %s6 = ssub.s32 1, %s4
  %s7 = scalar_select 0, %s6, %s4
  $region1: #{tpu_custom_call.1} parent=0
    #allocation2 [shape = 'u8[1024]{0}', space=vmem, size = 0x400, scoped, tag = 'output window, operand 0, single buffered']
    #allocation3 [shape = 's32[1]{0}', space=sflag, size = 0x4, scoped, tag = 'scoped memory for tpu_custom_call.1']
    %8 = vsyncpa [#allocation3], 0
    // Predicated region
    $region2: #{tpu_custom_call.1} parent=1 // pred_check
      _
    $region3: #{tpu_custom_call.1} parent=1 // pred_check_branch
      %10 = sbr.rel (0) target = $region5
    $region4: #{tpu_custom_call.1} parent=1 // pred_region
      _
    $region5: #{tpu_custom_call.1} parent=1 // pred_fallthru
      _
    // Predicated region
    $region6: #{tpu_custom_call.1} parent=1 // pred_check
      _
    $region7: #{tpu_custom_call.1} parent=1 // pred_check_branch
      %12 = sbr.rel (0) target = $region9
    $region8: #{tpu_custom_call.1} parent=1 // pred_region
      _
    $region9: #{tpu_custom_call.1} parent=1 // pred_fallthru
      _
    // Predicated region
    $region10: #{tpu_custom_call.1} parent=1 // pred_check
      _
    $region11: #{tpu_custom_call.1} parent=1 // pred_check_branch
      %14 = sbr.rel (0) target = $region13
    $region12: #{tpu_custom_call.1} parent=1 // pred_region
      _
    $region13: #{tpu_custom_call.1} parent=1 // pred_fallthru
      _
    %v15 = vld [vmem:[%s0] sm:$0x3]
    %v16 = vadd.f32 %v15, 4.0
    %v17 = vmax.f32 %v16, 0.0
    %v18 = vmin.f32 %v17, 8.0
    %v19 = vld [vmem:[%s2] sm:$0xff]
    %v20 = vld [vmem:[%s2 + $0x8] sm:$0xff]
    %v21 = vld [vmem:[%s2 + $0x10] sm:$0xff]
    %v22 = vld [vmem:[%s2 + $0x18] sm:$0xff]
    %v23 = vld [vmem:[%s2 + $0x20] sm:$0xff]
    %v24 = vld [vmem:[%s2 + $0x28] sm:$0xff]
    %v25 = vld [vmem:[%s2 + $0x30] sm:$0xff]
    %v26 = vld [vmem:[%s2 + $0x38] sm:$0xff]
    %v27 = vld [vmem:[%s2 + $0x40] sm:$0xff]
    %v28 = vld [vmem:[%s2 + $0x48] sm:$0xff]
    %v29 = vld [vmem:[%s2 + $0x50] sm:$0x1]
    %v30 = vlaneseq
    %v31 = vshrl.u32 %v30, 7
    %v32 = vsub.s32 0, %v31
    %v33 = vrot.slane %v18, %v32
    %35 = vset.pattern.permute.xlu0 0
    %36 = vperm.xlu0 %35, %v19
    %v37 = vpop.permute.xlu0 %36
    %40 = vset.pattern.permute.xlu0 0
    %41 = vperm.xlu0 %40, %v20
    %v42 = vpop.permute.xlu0 %41
    %45 = vset.pattern.permute.xlu0 0
    %46 = vperm.xlu0 %45, %v21
    %v47 = vpop.permute.xlu0 %46
    %50 = vset.pattern.permute.xlu0 0
    %51 = vperm.xlu0 %50, %v22
    %v52 = vpop.permute.xlu0 %51
    %55 = vset.pattern.permute.xlu0 0
    %56 = vperm.xlu0 %55, %v23
    %v57 = vpop.permute.xlu0 %56
    %60 = vset.pattern.permute.xlu0 0
    %61 = vperm.xlu0 %60, %v24
    %v62 = vpop.permute.xlu0 %61
    %65 = vset.pattern.permute.xlu0 0
    %66 = vperm.xlu0 %65, %v25
    %v67 = vpop.permute.xlu0 %66
    %70 = vset.pattern.permute.xlu0 0
    %71 = vperm.xlu0 %70, %v26
    %v72 = vpop.permute.xlu0 %71
    %75 = vset.pattern.permute.xlu0 0
    %76 = vperm.xlu0 %75, %v27
    %v77 = vpop.permute.xlu0 %76
    %80 = vset.pattern.permute.xlu0 0
    %81 = vperm.xlu0 %80, %v28
    %v82 = vpop.permute.xlu0 %81
    %85 = vset.pattern.permute.xlu0 0
    %86 = vperm.xlu0 %85, %v29
    %v87 = vpop.permute.xlu0 %86
    %v89 = vsub.f32 %v33, %v37
    %v90 = vsub.f32 %v33, %v42
    %v91 = vsub.f32 %v33, %v47
    %v92 = vsub.f32 %v33, %v52
    %v93 = vsub.f32 %v33, %v57
    %v94 = vsub.f32 %v33, %v62
    %v95 = vsub.f32 %v33, %v67
    %v96 = vsub.f32 %v33, %v72
    %v97 = vsub.f32 %v33, %v77
    %v98 = vsub.f32 %v33, %v82
    %v99 = vsub.f32 %v33, %v87
    %v100 = vand.u32 2147483647, %v89
    %v101 = vand.u32 2147483647, %v90
    %v102 = vand.u32 2147483647, %v91
    %v103 = vand.u32 2147483647, %v92
    %v104 = vand.u32 2147483647, %v93
    %v105 = vand.u32 2147483647, %v94
    %v106 = vand.u32 2147483647, %v95
    %v107 = vand.u32 2147483647, %v96
    %v108 = vand.u32 2147483647, %v97
    %v109 = vand.u32 2147483647, %v98
    %v110 = vand.u32 2147483647, %v99
    %v111 = vsub.f32 1.0, %v100
    %v112 = vsub.f32 1.0, %v101
    %v113 = vsub.f32 1.0, %v102
    %v114 = vsub.f32 1.0, %v103
    %v115 = vsub.f32 1.0, %v104
    %v116 = vsub.f32 1.0, %v105
    %v117 = vsub.f32 1.0, %v106
    %v118 = vsub.f32 1.0, %v107
    %v119 = vsub.f32 1.0, %v108
    %v120 = vsub.f32 1.0, %v109
    %v121 = vsub.f32 1.0, %v110
    %v122 = vmax.f32 %v111, 0.0
    %v123 = vmax.f32 %v112, 0.0
    %v124 = vmax.f32 %v113, 0.0
    %v125 = vmax.f32 %v114, 0.0
    %v126 = vmax.f32 %v115, 0.0
    %v127 = vmax.f32 %v116, 0.0
    %v128 = vmax.f32 %v117, 0.0
    %v129 = vmax.f32 %v118, 0.0
    %v130 = vmax.f32 %v119, 0.0
    %v131 = vmax.f32 %v120, 0.0
    %v132 = vmax.f32 %v121, 0.0
    %v133 = vlaneseq
    %v134 = vshrl.u32 %v133, 7
    %v135 = vsub.s32 1, %v134
    %v136 = vrot.slane %v18, %v135
    %137 = vset.pattern.permute.xlu0 1
    %138 = vperm.xlu0 %137, %v19
    %v139 = vpop.permute.xlu0 %138
    %141 = vset.pattern.permute.xlu0 1
    %142 = vperm.xlu0 %141, %v20
    %v143 = vpop.permute.xlu0 %142
    %145 = vset.pattern.permute.xlu0 1
    %146 = vperm.xlu0 %145, %v21
    %v147 = vpop.permute.xlu0 %146
    %149 = vset.pattern.permute.xlu0 1
    %150 = vperm.xlu0 %149, %v22
    %v151 = vpop.permute.xlu0 %150
    %153 = vset.pattern.permute.xlu0 1
    %154 = vperm.xlu0 %153, %v23
    %v155 = vpop.permute.xlu0 %154
    %157 = vset.pattern.permute.xlu0 1
    %158 = vperm.xlu0 %157, %v24
    %v159 = vpop.permute.xlu0 %158
    %161 = vset.pattern.permute.xlu0 1
    %162 = vperm.xlu0 %161, %v25
    %v163 = vpop.permute.xlu0 %162
    %165 = vset.pattern.permute.xlu0 1
    %166 = vperm.xlu0 %165, %v26
    %v167 = vpop.permute.xlu0 %166
    %169 = vset.pattern.permute.xlu0 1
    %170 = vperm.xlu0 %169, %v27
    %v171 = vpop.permute.xlu0 %170
    %173 = vset.pattern.permute.xlu0 1
    %174 = vperm.xlu0 %173, %v28
    %v175 = vpop.permute.xlu0 %174
    %177 = vset.pattern.permute.xlu0 1
    %178 = vperm.xlu0 %177, %v29
    %v179 = vpop.permute.xlu0 %178
    %v181 = vsub.f32 %v136, %v139
    %v182 = vsub.f32 %v136, %v143
    %v183 = vsub.f32 %v136, %v147
    %v184 = vsub.f32 %v136, %v151
    %v185 = vsub.f32 %v136, %v155
    %v186 = vsub.f32 %v136, %v159
    %v187 = vsub.f32 %v136, %v163
    %v188 = vsub.f32 %v136, %v167
    %v189 = vsub.f32 %v136, %v171
    %v190 = vsub.f32 %v136, %v175
    %v191 = vsub.f32 %v136, %v179
    %v192 = vand.u32 2147483647, %v181
    %v193 = vand.u32 2147483647, %v182
    %v194 = vand.u32 2147483647, %v183
    %v195 = vand.u32 2147483647, %v184
    %v196 = vand.u32 2147483647, %v185
    %v197 = vand.u32 2147483647, %v186
    %v198 = vand.u32 2147483647, %v187
    %v199 = vand.u32 2147483647, %v188
    %v200 = vand.u32 2147483647, %v189
    %v201 = vand.u32 2147483647, %v190
    %v202 = vand.u32 2147483647, %v191
    %v203 = vsub.f32 1.0, %v192
    %v204 = vsub.f32 1.0, %v193
    %v205 = vsub.f32 1.0, %v194
    %v206 = vsub.f32 1.0, %v195
    %v207 = vsub.f32 1.0, %v196
    %v208 = vsub.f32 1.0, %v197
    %v209 = vsub.f32 1.0, %v198
    %v210 = vsub.f32 1.0, %v199
    %v211 = vsub.f32 1.0, %v200
    %v212 = vsub.f32 1.0, %v201
    %v213 = vsub.f32 1.0, %v202
    %v214 = vmax.f32 %v203, 0.0
    %v215 = vmax.f32 %v204, 0.0
    %v216 = vmax.f32 %v205, 0.0
    %v217 = vmax.f32 %v206, 0.0
    %v218 = vmax.f32 %v207, 0.0
    %v219 = vmax.f32 %v208, 0.0
    %v220 = vmax.f32 %v209, 0.0
    %v221 = vmax.f32 %v210, 0.0
    %v222 = vmax.f32 %v211, 0.0
    %v223 = vmax.f32 %v212, 0.0
    %v224 = vmax.f32 %v213, 0.0
    %v225 = vmul.f32 %v122, %v214
    %v226 = vmul.f32 %v123, %v215
    %v227 = vmul.f32 %v124, %v216
    %v228 = vmul.f32 %v125, %v217
    %v229 = vmul.f32 %v126, %v218
    %v230 = vmul.f32 %v127, %v219
    %v231 = vmul.f32 %v128, %v220
    %v232 = vmul.f32 %v129, %v221
    %v233 = vmul.f32 %v130, %v222
    %v234 = vmul.f32 %v131, %v223
    %v235 = vmul.f32 %v132, %v224
    %v236 = vld [vmem:[%s1] sm:$0x3]
    %vm237 = vcmask 662528
    %v239 = vsel %vm237, %v236, 0
    %vm241 = vcmask 1040384
    %v243 = vsel %vm241, %v235, 0
    %245 = vmatprep.subr.mxu0 0.0
    %246 = vmatpush1.msra.mxu0 0.0
    %247 = vmatprep.subr.mxu0 0.0
    %248 = vmatpush1.msra.mxu0 0.0
    %249 = vmatprep.subr.mxu0 0.0
    %250 = vmatpush1.msra.mxu0 0.0
    %251 = vmatprep.subr.mxu0 0.0
    %252 = vmatpush1.msra.mxu0 0.0
    %253 = vmatprep.subr.mxu0 0.0
    %254 = vmatpush1.msra.mxu0 0.0
    %255 = vmatprep.subr.mxu0 0.0
    %256 = vmatpush1.msra.mxu0 %v243
    %257 = vmatprep.subr.mxu0 0.0
    %258 = vmatpush1.msra.mxu0 %v234
    %259 = vmatprep.subr.mxu0 0.0
    %260 = vmatpush1.msra.mxu0 %v233
    %261 = vmatprep.subr.mxu0 0.0
    %262 = vmatpush1.msra.mxu0 %v232
    %263 = vmatprep.subr.mxu0 0.0
    %264 = vmatpush1.msra.mxu0 %v231
    %265 = vmatprep.subr.mxu0 0.0
    %266 = vmatpush1.msra.mxu0 %v230
    %267 = vmatprep.subr.mxu0 0.0
    %268 = vmatpush1.msra.mxu0 %v229
    %269 = vmatprep.subr.mxu0 0.0
    %270 = vmatpush1.msra.mxu0 %v228
    %271 = vmatprep.subr.mxu0 0.0
    %272 = vmatpush1.msra.mxu0 %v227
    %273 = vmatprep.subr.mxu0 0.0
    %274 = vmatpush1.msra.mxu0 %v226
    %275 = vmatprep.subr.mxu0 0.0
    %276 = vmatpush1.msra.mxu0 %v225
    %277 = vmatprep.subr.mxu0 0.0
    %278 = vmatpush2.msra.mxu0 0.0
    %279 = vmatprep.subr.mxu0 0.0
    %280 = vmatpush2.msra.mxu0 0.0
    %281 = vmatprep.subr.mxu0 0.0
    %282 = vmatpush2.msra.mxu0 0.0
    %283 = vmatprep.subr.mxu0 0.0
    %284 = vmatpush2.msra.mxu0 0.0
    %285 = vmatprep.subr.mxu0 0.0
    %286 = vmatpush2.msra.mxu0 0.0
    %287 = vmatprep.subr.mxu0 0.0
    %288 = vmatpush2.msra.mxu0 0.0
    %289 = vmatprep.subr.mxu0 0.0
    %290 = vmatpush2.msra.mxu0 0.0
    %291 = vmatprep.subr.mxu0 0.0
    %292 = vmatpush2.msra.mxu0 0.0
    %293 = vmatprep.subr.mxu0 0.0
    %294 = vmatpush2.msra.mxu0 0.0
    %295 = vmatprep.subr.mxu0 0.0
    %296 = vmatpush2.msra.mxu0 0.0
    %297 = vmatprep.subr.mxu0 0.0
    %298 = vmatpush2.msra.mxu0 0.0
    %299 = vmatprep.subr.mxu0 0.0
    %300 = vmatpush2.msra.mxu0 0.0
    %301 = vmatprep.subr.mxu0 0.0
    %302 = vmatpush2.msra.mxu0 0.0
    %303 = vmatprep.subr.mxu0 0.0
    %304 = vmatpush2.msra.mxu0 0.0
    %305 = vmatprep.subr.mxu0 0.0
    %306 = vmatpush2.msra.mxu0 0.0
    %307 = vmatprep.subr.mxu0 0.0
    %308 = vmatpush2.msra.mxu0 0.0
    %309 = vmatprep.mubr.f32.mxu0 0.0
    %310 = vmatmul.mubr.f32.gmra.mxu0 %v239
    %v311 = vpop.f32.mrf.mxu0
    %v312 = vadd.f32 0.0, %v311
    %v313 = vpop.f32.mrf.mxu0
    %314 = vdwg.mxu0
    %315 = vst [vmem:[#allocation2] sm:$0x3] %v312
    // Predicated region
    $region14: #{tpu_custom_call.1} parent=1 // pred_check
      _
    $region15: #{tpu_custom_call.1} parent=1 // pred_check_branch
      %317 = sbr.rel (0) target = $region17
    $region16: #{tpu_custom_call.1} parent=1 // pred_region
      %s319 = ssub.s32 32, 32
      %320 = vsyncadd [#allocation3], %s319
      %s322 = sshll.u32 [#allocation2], 4
      %s323 = int_to_ptr.vmem [resolvable:$true] %s322
      %325 = dma.vmem_to_hbm [thread:$0]  %s323, 32, %s3, [#allocation3]
    $region17: #{tpu_custom_call.1} parent=1 // pred_fallthru
      _
    // Predicated region
    $region18: #{tpu_custom_call.1} parent=1 // pred_check
      _
    $region19: #{tpu_custom_call.1} parent=1 // pred_check_branch
      %327 = sbr.rel (0) target = $region21
    $region20: #{tpu_custom_call.1} parent=1 // pred_region
      %328 = dma.done [#allocation3], 32
    $region21: #{tpu_custom_call.1} parent=1 // pred_fallthru
      _
    %329 = vsyncpa [#allocation3], 1

</llo_original>
